<compile_context>
chip_gen: v5e
topology: v5e:2x2
jax: 0.10.0
libtpu: 0.0.40
codegen_flags: <defaults>
</compile_context>

<pallas_src>
from functools import partial

import jax
import jax.numpy as jnp
from jax.experimental import pallas as pl
from jax.experimental.pallas import tpu as pltpu


def channel_gate_kernel(x_ref, w1t_ref, b1_ref, w2t_ref, b2x2_ref, o_ref, *, inv_hw):
    # x_ref block: (Bt, C, HW) in the I/O dtype; weights/biases are f32.
    bt = x_ref.shape[0]

    # Global pools over the spatial (lane) axis.  Upcast per-vreg inside the
    # reductions; no persistent f32 copy of the slab stays live to the store.
    avg = jnp.sum(x_ref[...].astype(jnp.float32), axis=2) * inv_hw        # (Bt, C)
    mx = jnp.max(x_ref[...].astype(jnp.float32), axis=2)                  # (Bt, C)

    # Shared 2-layer MLP; both pools batched into one MXU operand.
    # torch Linear: y = p @ W.T + b ; weights arrive pre-transposed and the
    # second bias arrives pre-doubled: att = W2·(h_avg + h_max) + 2·b2.
    p = jnp.concatenate([avg, mx], axis=0)                                # (2*Bt, C)
    h = jnp.dot(p, w1t_ref[...], preferred_element_type=jnp.float32) + b1_ref[...]
    h = jnp.maximum(h, 0.0)                                               # (2*Bt, Hd)
    h = h[:bt] + h[bt:]                                                   # (Bt, Hd)
    att = jnp.dot(h, w2t_ref[...], preferred_element_type=jnp.float32) + b2x2_ref[...]
    scale = jax.nn.sigmoid(att).astype(o_ref.dtype)                       # (Bt, C)

    # Elementwise rescale in the I/O dtype (packed bf16 vregs on v6e/v7x).
    o_ref[...] = x_ref[...] * scale[:, :, None]


def _vmem_capacity_bytes():
    """Physical VMEM per TensorCore; conservative (v7x) fallback if unknown."""
    try:
        cap = getattr(pltpu.get_tpu_info(), "vmem_capacity_bytes", None)
        if cap:
            return int(cap)
    except Exception:
        pass
    return 64 * 1024 * 1024


def channel_gate(x, w1, b1, w2, b2, *, vmem_pipeline_budget=None, donate_x=False):
    """x: (B, C, H, W) f32/bf16.  Returns x * sigmoid(mlp(avgpool) + mlp(maxpool))."""
    B, C, H, W = x.shape
    HW = H * W
    Hd = w1.shape[0]
    itemsize = jnp.dtype(x.dtype).itemsize

    # Generation-aware budgets: ~32 MiB pipeline / 64 MiB limit on v5e/v6e
    # (128 MiB VMEM), ~16 MiB / 32 MiB on v7x (64 MiB VMEM).
    vmem_cap = _vmem_capacity_bytes()
    if vmem_pipeline_budget is None:
        vmem_pipeline_budget = vmem_cap // 4
    vmem_limit = min(vmem_cap // 2, 64 * 1024 * 1024)

    # Unpadded lane axis: legal because the block's last two dims equal the
    # full array dims; avoids a pad pass + a slice pass over HBM.
    x_flat = x.reshape(B, C, HW)

    # Pre-transpose the Linear weights on the host; fold the 2x into b2.
    w1t = jnp.asarray(w1, jnp.float32).T.reshape(C, Hd)                   # (C, Hd)
    w2t = jnp.asarray(w2, jnp.float32).T.reshape(Hd, C)                   # (Hd, C)
    b1r = jnp.asarray(b1, jnp.float32).reshape(1, Hd)
    b2x2 = (2.0 * jnp.asarray(b2, jnp.float32)).reshape(1, C)

    # Per-step working set: double-buffered in+out blocks, one transient f32
    # slab for the reduction temporaries, and the (tiny) resident weights.
    weight_bytes = 4 * (2 * C * Hd + Hd + C)

    def step_bytes(bt):
        return 4 * bt * C * HW * itemsize + bt * C * HW * 4 + weight_bytes

    divisors = [d for d in range(1, B + 1) if B % d == 0]
    fits = [d for d in divisors if step_bytes(d) <= vmem_pipeline_budget]
    if not fits:
        raise ValueError(
            "ChannelGate: a single (1, C, HW) block does not fit the VMEM "
            f"pipeline budget ({step_bytes(1)} > {vmem_pipeline_budget} bytes); "
            "this shape needs the HW-tiled path (see TODO at top of file).")

    # Prefer >= 4 (and even) grid steps so both v7x TensorCores get >= 2
    # pipelined steps each; >= 4 total steps is also what actually enables
    # prefetch/writeback overlap on single-core v5e/v6e.
    pref4 = [d for d in fits if (B // d) >= 4 and (B // d) % 2 == 0]
    pref2 = [d for d in fits if (B // d) >= 2]
    Bt = max(pref4) if pref4 else (max(pref2) if pref2 else max(fits))
    grid = (B // Bt,)

    kernel = partial(channel_gate_kernel, inv_hw=1.0 / HW)

    out = pl.pallas_call(
        kernel,
        out_shape=jax.ShapeDtypeStruct((B, C, HW), x.dtype),
        grid_spec=pltpu.PrefetchScalarGridSpec(
            num_scalar_prefetch=0,
            grid=grid,
            in_specs=[
                pl.BlockSpec((Bt, C, HW), lambda b: (b, 0, 0)),
                pl.BlockSpec((C, Hd), lambda b: (0, 0)),
                pl.BlockSpec((1, Hd), lambda b: (0, 0)),
                pl.BlockSpec((Hd, C), lambda b: (0, 0)),
                pl.BlockSpec((1, C), lambda b: (0, 0)),
            ],
            out_specs=pl.BlockSpec((Bt, C, HW), lambda b: (b, 0, 0)),
        ),
        compiler_params=pltpu.CompilerParams(
            dimension_semantics=("parallel",),
            vmem_limit_bytes=vmem_limit,
        ),
        input_output_aliases=({0: 0} if donate_x else {}),
    )(x_flat, w1t, b1r, w2t, b2x2)

    return out.reshape(B, C, H, W)


def channel_gate_ref(x, w1, b1, w2, b2):
    # Pure-JAX reference mirroring the PyTorch forward (compute in f32).
    xf = x.astype(jnp.float32)
    avg = jnp.mean(xf, axis=(2, 3))                # (B, C)
    mx = jnp.max(xf, axis=(2, 3))                  # (B, C)

    def mlp(p):
        h = jnp.maximum(p @ w1.T + b1, 0.0)
        return h @ w2.T + b2

    scale = jax.nn.sigmoid(mlp(avg) + mlp(mx))[:, :, None, None]
    return (xf * scale).astype(x.dtype)


if __name__ == "__main__":
    # Module config: gate_channels=32, reduction_ratio=4 -> hidden=8
    B, C, H, W = 2, 32, 16, 16
    reduction = 4
    Hd = C // reduction

    key = jax.random.PRNGKey(0)
    kx, k1, k2, k3, k4 = jax.random.split(key, 5)
    x = jax.random.normal(kx, (B, C, H, W), dtype=jnp.float32)
    # Deterministic "Linear" params (torch layout: weight (out, in), bias (out,))
    w1 = jax.random.normal(k1, (Hd, C), dtype=jnp.float32) * 0.1
    b1 = jax.random.normal(k2, (Hd,), dtype=jnp.float32) * 0.1
    w2 = jax.random.normal(k3, (C, Hd), dtype=jnp.float32) * 0.1
    b2 = jax.random.normal(k4, (C,), dtype=jnp.float32) * 0.1

    # 1) main f32 path (HW = 256)
    out = jax.block_until_ready(channel_gate(x, w1, b1, w2, b2))
    ref = channel_gate_ref(x, w1, b1, w2, b2)
    assert out.shape == (B, C, H, W)
    assert jnp.allclose(out, ref, atol=1e-5, rtol=1e-5), "f32 mismatch vs reference"

    # 2) HW not a multiple of 128 (10x10 -> 100): no host pad, no slice.
    xp = jax.random.normal(kx, (4, C, 10, 10), dtype=jnp.float32)
    outp = jax.block_until_ready(channel_gate(xp, w1, b1, w2, b2))
    refp = channel_gate_ref(xp, w1, b1, w2, b2)
    assert jnp.allclose(outp, refp, atol=1e-5, rtol=1e-5), "non-128 HW mismatch vs reference"

    # 3) bf16 I/O path (pools/MLP in f32; rescale in bf16)
    xb = x.astype(jnp.bfloat16)
    outb = jax.block_until_ready(channel_gate(xb, w1, b1, w2, b2))
    refb = channel_gate_ref(xb, w1, b1, w2, b2)
    assert outb.dtype == jnp.bfloat16
    assert jnp.allclose(outb.astype(jnp.float32), refb.astype(jnp.float32),
                        atol=3e-2, rtol=3e-2), "bf16 mismatch vs reference"

    # 4) donated-input path: input_output_aliases={0: 0} under jit donation.
    gate_donated = jax.jit(lambda xx: channel_gate(xx, w1, b1, w2, b2, donate_x=True),
                           donate_argnums=(0,))
    x_donor = x + 0.0
    outd = jax.block_until_ready(gate_donated(x_donor))
    assert jnp.allclose(outd, ref, atol=1e-5, rtol=1e-5), "donated-input mismatch vs reference"

    print("KERNEL_OK")
</pallas_src>

<mosaic_0001>
module attributes {stable_mosaic.version = 11 : i64} {
  func.func @channel_gate_kernel(%arg0: i32, %arg1: memref<1x32x256xf32, #tpu.memory_space<vmem>>, %arg2: memref<32x8xf32, #tpu.memory_space<vmem>>, %arg3: memref<1x8xf32, #tpu.memory_space<vmem>>, %arg4: memref<8x32xf32, #tpu.memory_space<vmem>>, %arg5: memref<1x32xf32, #tpu.memory_space<vmem>>, %arg6: memref<1x32x256xf32, #tpu.memory_space<vmem>>) attributes {dimension_semantics = [#tpu.dimension_semantics<parallel>], iteration_bounds = array<i64: 2>, scalar_prefetch = 0 : i64, scratch_operands = 0 : i64, tpu.core_type = #tpu.core_type<tc>, window_params = [{transform_indices = @transform_0, window_bounds = array<i64: 1, 32, 256>}, {pipeline_mode = #tpu.pipeline_mode<synchronous>, transform_indices = @transform_1, window_bounds = array<i64: 32, 8>}, {pipeline_mode = #tpu.pipeline_mode<synchronous>, transform_indices = @transform_2, window_bounds = array<i64: 1, 8>}, {pipeline_mode = #tpu.pipeline_mode<synchronous>, transform_indices = @transform_3, window_bounds = array<i64: 8, 32>}, {pipeline_mode = #tpu.pipeline_mode<synchronous>, transform_indices = @transform_4, window_bounds = array<i64: 1, 32>}, {transform_indices = @transform_5, window_bounds = array<i64: 1, 32, 256>}]} {
    %c0 = arith.constant 0 : index
    %c0_0 = arith.constant 0 : index
    %c0_1 = arith.constant 0 : index
    %0 = vector.load %arg1[%c0, %c0_0, %c0_1] : memref<1x32x256xf32, #tpu.memory_space<vmem>>, vector<1x32x256xf32>
    %cst = arith.constant dense<0.000000e+00> : vector<1x32xf32>
    %1 = vector.multi_reduction <add>, %0, %cst [2] : vector<1x32x256xf32> to vector<1x32xf32>
    %cst_2 = arith.constant 3.906250e-03 : f32
    %2 = vector.broadcast %cst_2 : f32 to vector<1x32xf32>
    %3 = arith.mulf %1, %2 : vector<1x32xf32>
    %c0_3 = arith.constant 0 : index
    %c0_4 = arith.constant 0 : index
    %c0_5 = arith.constant 0 : index
    %4 = vector.load %arg1[%c0_3, %c0_4, %c0_5] : memref<1x32x256xf32, #tpu.memory_space<vmem>>, vector<1x32x256xf32>
    %cst_6 = arith.constant dense<0xFF800000> : vector<1x32xf32>
    %5 = vector.multi_reduction <maximumf>, %4, %cst_6 [2] : vector<1x32x256xf32> to vector<1x32xf32>
    %6 = tpu.concatenate %3, %5 in 0 : vector<1x32xf32>, vector<1x32xf32> -> vector<2x32xf32>
    %c0_7 = arith.constant 0 : index
    %c0_8 = arith.constant 0 : index
    %7 = vector.load %arg2[%c0_7, %c0_8] : memref<32x8xf32, #tpu.memory_space<vmem>>, vector<32x8xf32>
    %cst_9 = arith.constant dense<0.000000e+00> : vector<2x8xf32>
    %8 = tpu.matmul %6, %7, %cst_9 {dimension_numbers = #tpu.dot_dimension_numbers<[1], [0], [0], [1], [0, 0, 1, 1], [], []>} : vector<2x32xf32>, vector<32x8xf32>, vector<2x8xf32> -> vector<2x8xf32>
    %c0_10 = arith.constant 0 : index
    %c0_11 = arith.constant 0 : index
    %9 = vector.load %arg3[%c0_10, %c0_11] : memref<1x8xf32, #tpu.memory_space<vmem>>, vector<1x8xf32>
    %10 = vector.broadcast %9 : vector<1x8xf32> to vector<2x8xf32>
    %11 = arith.addf %8, %10 : vector<2x8xf32>
    %cst_12 = arith.constant 0.000000e+00 : f32
    %12 = vector.broadcast %cst_12 : f32 to vector<2x8xf32>
    %13 = arith.maximumf %11, %12 : vector<2x8xf32>
    %14 = vector.extract_strided_slice %13 {offsets = [0, 0], sizes = [1, 8], strides = [1, 1]} : vector<2x8xf32> to vector<1x8xf32>
    %15 = vector.extract_strided_slice %13 {offsets = [1, 0], sizes = [1, 8], strides = [1, 1]} : vector<2x8xf32> to vector<1x8xf32>
    %16 = arith.addf %14, %15 : vector<1x8xf32>
    %c0_13 = arith.constant 0 : index
    %c0_14 = arith.constant 0 : index
    %17 = vector.load %arg4[%c0_13, %c0_14] : memref<8x32xf32, #tpu.memory_space<vmem>>, vector<8x32xf32>
    %cst_15 = arith.constant dense<0.000000e+00> : vector<1x32xf32>
    %18 = tpu.matmul %16, %17, %cst_15 {dimension_numbers = #tpu.dot_dimension_numbers<[1], [0], [0], [1], [0, 0, 1, 1], [], []>} : vector<1x8xf32>, vector<8x32xf32>, vector<1x32xf32> -> vector<1x32xf32>
    %c0_16 = arith.constant 0 : index
    %c0_17 = arith.constant 0 : index
    %19 = vector.load %arg5[%c0_16, %c0_17] : memref<1x32xf32, #tpu.memory_space<vmem>>, vector<1x32xf32>
    %20 = arith.addf %18, %19 : vector<1x32xf32>
    %21 = arith.negf %20 : vector<1x32xf32>
    %22 = math.exp %21 : vector<1x32xf32>
    %cst_18 = arith.constant 1.000000e+00 : f32
    %23 = vector.broadcast %cst_18 : f32 to vector<1x32xf32>
    %24 = arith.addf %23, %22 : vector<1x32xf32>
    %25 = arith.divf %23, %24 : vector<1x32xf32>
    %c0_19 = arith.constant 0 : index
    %c0_20 = arith.constant 0 : index
    %c0_21 = arith.constant 0 : index
    %26 = vector.load %arg1[%c0_19, %c0_20, %c0_21] : memref<1x32x256xf32, #tpu.memory_space<vmem>>, vector<1x32x256xf32>
    %27 = vector.shape_cast %25 : vector<1x32xf32> to vector<1x32x1xf32>
    %28 = vector.broadcast %27 : vector<1x32x1xf32> to vector<1x32x256xf32>
    %29 = arith.mulf %26, %28 : vector<1x32x256xf32>
    %c0_22 = arith.constant 0 : index
    %c0_23 = arith.constant 0 : index
    %c0_24 = arith.constant 0 : index
    %30 = vector.load %arg6[%c0_22, %c0_23, %c0_24] : memref<1x32x256xf32, #tpu.memory_space<vmem>>, vector<1x32x256xf32>
    tpu.vector_store %arg6[%c0_22, %c0_23, %c0_24], %29 {strides = array<i32>} : memref<1x32x256xf32, #tpu.memory_space<vmem>>, vector<1x32x256xf32>,
    return
  }
  func.func @transform_0(%arg0: i32) -> (i32, i32, i32) {
    %c0_i32 = arith.constant 0 : i32
    %c0_i32_0 = arith.constant 0 : i32
    %c0_i32_1 = arith.constant 0 : i32
    return %arg0, %c0_i32, %c0_i32_0 : i32, i32, i32
  }
  func.func @transform_1(%arg0: i32) -> (i32, i32) {
    %c0_i32 = arith.constant 0 : i32
    %c0_i32_0 = arith.constant 0 : i32
    %c0_i32_1 = arith.constant 0 : i32
    return %c0_i32, %c0_i32_0 : i32, i32
  }
  func.func @transform_2(%arg0: i32) -> (i32, i32) {
    %c0_i32 = arith.constant 0 : i32
    %c0_i32_0 = arith.constant 0 : i32
    %c0_i32_1 = arith.constant 0 : i32
    return %c0_i32, %c0_i32_0 : i32, i32
  }
  func.func @transform_3(%arg0: i32) -> (i32, i32) {
    %c0_i32 = arith.constant 0 : i32
    %c0_i32_0 = arith.constant 0 : i32
    %c0_i32_1 = arith.constant 0 : i32
    return %c0_i32, %c0_i32_0 : i32, i32
  }
  func.func @transform_4(%arg0: i32) -> (i32, i32) {
    %c0_i32 = arith.constant 0 : i32
    %c0_i32_0 = arith.constant 0 : i32
    %c0_i32_1 = arith.constant 0 : i32
    return %c0_i32, %c0_i32_0 : i32, i32
  }
  func.func @transform_5(%arg0: i32) -> (i32, i32, i32) {
    %c0_i32 = arith.constant 0 : i32
    %c0_i32_0 = arith.constant 0 : i32
    %c0_i32_1 = arith.constant 0 : i32
    return %arg0, %c0_i32, %c0_i32_0 : i32, i32, i32
  }
}

</mosaic_0001>

<llo_original>
// kernel: tpu_custom_call.1
$region0: #{tpu_custom_call.1}
  #allocation0 [shape = 'u32[]', space=smem, size = 0x4, offset = 0x4, fixed_abs, tag = 'smem constant byte address 0x4 - core index']
  #allocation1 [shape = 'u32[72,128]{1,0:T(1,128)}', space=vmem, size = 0x9000, scoped, tag = 'internal scratch']
  %s0 = inlined_call_operand.hbm [shape: f32[2,32,256], index: 0, kind: input, shape index: {}]
  %s1 = inlined_call_operand.vmem [shape: f32[32,8], index: 1, kind: input, shape index: {}]
  %s2 = inlined_call_operand.vmem [shape: f32[1,8], index: 2, kind: input, shape index: {}]
  %s3 = inlined_call_operand.vmem [shape: f32[8,32], index: 3, kind: input, shape index: {}]
  %s4 = inlined_call_operand.vmem [shape: f32[1,32], index: 4, kind: input, shape index: {}]
  %s5 = inlined_call_operand.hbm [shape: f32[2,32,256], index: 5, kind: output, shape index: {}]
  %s6 = sld [smem:[#allocation0]]
  $region57: #{tpu_custom_call.1} parent=0
    _
  %s8 = ssub.s32 1, %s6
  %s9 = scalar_select 0, %s8, %s6
  $region1: #{tpu_custom_call.1} parent=0
    #allocation2 [shape = 'u8[65536]{0}', space=vmem, size = 0x10000, scoped, tag = 'input window, operand 0']
    #allocation3 [shape = 's32[2]{0}', space=sflag, size = 0x8, scoped, tag = 'scoped memory for tpu_custom_call.1']
    #allocation4 [shape = 's32[2]{0}', space=sflag, size = 0x8, scoped, tag = 'scoped memory for tpu_custom_call.1']
    #allocation5 [shape = 'u8[65536]{0}', space=vmem, size = 0x10000, scoped, tag = 'output window, operand 0']
    %10 = vsyncpa [#allocation3], 0
    %s11 = scalar_lea.sflag [#allocation3], 1
    %12 = vsyncpa %s11, 0
    %13 = vsyncpa [#allocation4], 0
    %s14 = scalar_lea.sflag [#allocation4], 1
    %15 = vsyncpa %s14, 0
    loop: start=0, step=1, limit=4
    $region2: #{tpu_custom_call.1} parent=1 // loop_pre_header
      _
    $region3: #{tpu_custom_call.1} parent=1 // loop_header
      %s17 = sphi 0, %s21
      %p18 = scmp.ge.s32.totalorder %s17, 4
      %s27 = sphi 0, %s29
      %s30 = sphi 0, %s27
      %s31 = sphi 0, %s30
      %s47 = sphi 0, %s31
      %s51 = sphi 0, %s51
      %s53 = sphi 0, %s51
      %s54 = sphi 0, %s53
      %s68 = sphi 0, %s54
      %s72 = sphi 0, %s72
      %s74 = sphi 0, %s72
      %s75 = sphi 0, %s74
      %s89 = sphi 0, %s75
      %s93 = sphi 0, %s93
      %s95 = sphi 0, %s93
      %s96 = sphi 0, %s95
      %s110 = sphi 0, %s96
      %s114 = sphi 0, %s114
      %s116 = sphi 0, %s114
      %s117 = sphi 0, %s116
      %s131 = sphi 0, %s117
      %s137 = sphi 0, %s139
      %s140 = sphi 0, %s137
      %s141 = sphi 0, %s140
      %s157 = sphi 0, %s141
    $region4: #{tpu_custom_call.1} parent=1 // loop_header_branch
      %20 = sbr.rel (%p18) target = $region8
    $region5: #{tpu_custom_call.1} parent=1 // loop_body
      %s22 = ssub.s32 %s17, 1
      %s23 = ssub.s32 %s17, 2
      %s24 = sadd.s32 %s17, 1
      %s25 = ssub.s32 %s17, %s24
      %p26 = scmp.eq.s32.totalorder %s25, 0
      %s28 = sadd.s32 %s27, 1
      %s29 = scalar_select %p26, %s27, %s28
      %p32 = pneg %p26
      %p33 = scmp.eq.s32.totalorder %s17, 1
      %p34 = por %p32, %p33
      %p35 = scmp.ne.s32.totalorder %s27, %s30
      %p36 = scmp.eq.s32.totalorder %s17, 0
      %p37 = por %p35, %p36
      %p38 = scmp.ne.s32.totalorder %s27, %s30
      %p39 = scmp.eq.s32.totalorder %s22, 1
      %p40 = por %p38, %p39
      %p41 = scmp.ne.s32.totalorder %s30, %s31
      %p42 = scmp.eq.s32.totalorder %s22, 0
      %p43 = por %p41, %p42
      %p44 = scmp.ne.s32.totalorder %s30, %s31
      %p45 = scmp.eq.s32.totalorder %s23, 1
      %p46 = por %p44, %p45
      %p48 = scmp.ne.s32.totalorder %s31, %s47
      %p49 = scmp.eq.s32.totalorder %s23, 0
      %p50 = por %p48, %p49
      %s52 = sadd.s32 %s51, 1
      %p55 = scmp.eq.s32.totalorder %s17, 1
      %p56 = scmp.ne.s32.totalorder %s51, %s53
      %p57 = scmp.eq.s32.totalorder %s17, 0
      %p58 = por %p56, %p57
      %p59 = scmp.ne.s32.totalorder %s51, %s53
      %p60 = scmp.eq.s32.totalorder %s22, 1
      %p61 = por %p59, %p60
      %p62 = scmp.ne.s32.totalorder %s53, %s54
      %p63 = scmp.eq.s32.totalorder %s22, 0
      %p64 = por %p62, %p63
      %p65 = scmp.ne.s32.totalorder %s53, %s54
      %p66 = scmp.eq.s32.totalorder %s23, 1
      %p67 = por %p65, %p66
      %p69 = scmp.ne.s32.totalorder %s54, %s68
      %p70 = scmp.eq.s32.totalorder %s23, 0
      %p71 = por %p69, %p70
      %s73 = sadd.s32 %s72, 1
      %p76 = scmp.eq.s32.totalorder %s17, 1
      %p77 = scmp.ne.s32.totalorder %s72, %s74
      %p78 = scmp.eq.s32.totalorder %s17, 0
      %p79 = por %p77, %p78
      %p80 = scmp.ne.s32.totalorder %s72, %s74
      %p81 = scmp.eq.s32.totalorder %s22, 1
      %p82 = por %p80, %p81
      %p83 = scmp.ne.s32.totalorder %s74, %s75
      %p84 = scmp.eq.s32.totalorder %s22, 0
      %p85 = por %p83, %p84
      %p86 = scmp.ne.s32.totalorder %s74, %s75
      %p87 = scmp.eq.s32.totalorder %s23, 1
      %p88 = por %p86, %p87
      %p90 = scmp.ne.s32.totalorder %s75, %s89
      %p91 = scmp.eq.s32.totalorder %s23, 0
      %p92 = por %p90, %p91
      %s94 = sadd.s32 %s93, 1
      %p97 = scmp.eq.s32.totalorder %s17, 1
      %p98 = scmp.ne.s32.totalorder %s93, %s95
      %p99 = scmp.eq.s32.totalorder %s17, 0
      %p100 = por %p98, %p99
      %p101 = scmp.ne.s32.totalorder %s93, %s95
      %p102 = scmp.eq.s32.totalorder %s22, 1
      %p103 = por %p101, %p102
      %p104 = scmp.ne.s32.totalorder %s95, %s96
      %p105 = scmp.eq.s32.totalorder %s22, 0
      %p106 = por %p104, %p105
      %p107 = scmp.ne.s32.totalorder %s95, %s96
      %p108 = scmp.eq.s32.totalorder %s23, 1
      %p109 = por %p107, %p108
      %p111 = scmp.ne.s32.totalorder %s96, %s110
      %p112 = scmp.eq.s32.totalorder %s23, 0
      %p113 = por %p111, %p112
      %s115 = sadd.s32 %s114, 1
      %p118 = scmp.eq.s32.totalorder %s17, 1
      %p119 = scmp.ne.s32.totalorder %s114, %s116
      %p120 = scmp.eq.s32.totalorder %s17, 0
      %p121 = por %p119, %p120
      %p122 = scmp.ne.s32.totalorder %s114, %s116
      %p123 = scmp.eq.s32.totalorder %s22, 1
      %p124 = por %p122, %p123
      %p125 = scmp.ne.s32.totalorder %s116, %s117
      %p126 = scmp.eq.s32.totalorder %s22, 0
      %p127 = por %p125, %p126
      %p128 = scmp.ne.s32.totalorder %s116, %s117
      %p129 = scmp.eq.s32.totalorder %s23, 1
      %p130 = por %p128, %p129
      %p132 = scmp.ne.s32.totalorder %s117, %s131
      %p133 = scmp.eq.s32.totalorder %s23, 0
      %p134 = por %p132, %p133
      %s135 = ssub.s32 %s17, %s24
      %p136 = scmp.eq.s32.totalorder %s135, 0
      %s138 = sadd.s32 %s137, 1
      %s139 = scalar_select %p136, %s137, %s138
      %p142 = pneg %p136
      %p143 = scmp.eq.s32.totalorder %s17, 1
      %p144 = por %p142, %p143
      %p145 = scmp.ne.s32.totalorder %s137, %s140
      %p146 = scmp.eq.s32.totalorder %s17, 0
      %p147 = por %p145, %p146
      %p148 = scmp.ne.s32.totalorder %s137, %s140
      %p149 = scmp.eq.s32.totalorder %s22, 1
      %p150 = por %p148, %p149
      %p151 = scmp.ne.s32.totalorder %s140, %s141
      %p152 = scmp.eq.s32.totalorder %s22, 0
      %p153 = por %p151, %p152
      %p154 = scmp.ne.s32.totalorder %s140, %s141
      %p155 = scmp.eq.s32.totalorder %s23, 1
      %p156 = por %p154, %p155
      %p158 = scmp.ne.s32.totalorder %s141, %s157
      %p159 = scmp.eq.s32.totalorder %s23, 0
      %p160 = por %p158, %p159
      %p161 = scmp.le.s32.totalorder 1, %s17
      %p162 = scmp.lt.s32.totalorder %s17, 3
      %p163 = pnand %p161, %p162
      %p164 = pneg %p163
      // Predicated region
      $region9: #{tpu_custom_call.1} parent=5 // pred_check
        _
      $region10: #{tpu_custom_call.1} parent=5 // pred_check_branch
        %166 = sbr.rel (%p163) target = $region12
      $region11: #{tpu_custom_call.1} parent=5 // pred_region
        %s167 = ssub.s32 %s17, 1
        // Predicated region
        $region13: #{tpu_custom_call.1} parent=11 // pred_check
          %p168 = pneg %p64
        $region14: #{tpu_custom_call.1} parent=11 // pred_check_branch
          %170 = sbr.rel (%p168) target = $region16
        $region15: #{tpu_custom_call.1} parent=11 // pred_region
          _
        $region16: #{tpu_custom_call.1} parent=11 // pred_fallthru
          _
        // Predicated region
        $region17: #{tpu_custom_call.1} parent=11 // pred_check
          %p171 = pneg %p85
        $region18: #{tpu_custom_call.1} parent=11 // pred_check_branch
          %173 = sbr.rel (%p171) target = $region20
        $region19: #{tpu_custom_call.1} parent=11 // pred_region
          _
        $region20: #{tpu_custom_call.1} parent=11 // pred_fallthru
          _
        // Predicated region
        $region21: #{tpu_custom_call.1} parent=11 // pred_check
          %p174 = pneg %p106
        $region22: #{tpu_custom_call.1} parent=11 // pred_check_branch
          %176 = sbr.rel (%p174) target = $region24
        $region23: #{tpu_custom_call.1} parent=11 // pred_region
          _
        $region24: #{tpu_custom_call.1} parent=11 // pred_fallthru
          _
        // Predicated region
        $region25: #{tpu_custom_call.1} parent=11 // pred_check
          %p177 = pneg %p127
        $region26: #{tpu_custom_call.1} parent=11 // pred_check_branch
          %179 = sbr.rel (%p177) target = $region28
        $region27: #{tpu_custom_call.1} parent=11 // pred_region
          _
        $region28: #{tpu_custom_call.1} parent=11 // pred_fallthru
          _
      $region12: #{tpu_custom_call.1} parent=5 // pred_fallthru
        _
      %p180 = scmp.lt.s32.totalorder %s17, 2
      // Predicated region
      $region29: #{tpu_custom_call.1} parent=5 // pred_check
        %p181 = pneg %p180
      $region30: #{tpu_custom_call.1} parent=5 // pred_check_branch
        %183 = sbr.rel (%p181) target = $region32
      $region31: #{tpu_custom_call.1} parent=5 // pred_region
        // Predicated region
        $region33: #{tpu_custom_call.1} parent=31 // pred_check
          %p184 = pneg %p37
        $region34: #{tpu_custom_call.1} parent=31 // pred_check_branch
          %186 = sbr.rel (%p184) target = $region36
        $region35: #{tpu_custom_call.1} parent=31 // pred_region
          %s187 = sand.u32 %s27, 1
          %s188 = scalar_lea.sflag [#allocation3], %s187
          %s189 = sand.u32 %s27, 1
          %s190 = smul.addr %s189, 64
          %s191 = scalar_lea.vmem [#allocation2], %s190
          %193 = vsyncadd %s188, 0
          %s194 = smul.addr %s17, 8
          %s195 = smul.addr %s194, 8
          %s196 = scalar_lea.hbm %s0, %s195
          %s197 = sshll.u32 %s196, 4
          %s198 = int_to_ptr.hbm [resolvable:$true] %s197
          %s199 = sshll.u32 %s191, 4
          %s200 = int_to_ptr.vmem [resolvable:$true] %s199
          %205 = dma.hbm_to_vmem [thread:$0]  %s198, 1024, %s200, %s188, 256, 256, 16
        $region36: #{tpu_custom_call.1} parent=31 // pred_fallthru
          _
      $region32: #{tpu_custom_call.1} parent=5 // pred_fallthru
        _
      %p206 = scmp.le.s32.totalorder 1, %s17
      %p207 = scmp.lt.s32.totalorder %s17, 3
      %p208 = pnand %p206, %p207
      %p209 = pneg %p208
      // Predicated region
      $region37: #{tpu_custom_call.1} parent=5 // pred_check
        _
      $region38: #{tpu_custom_call.1} parent=5 // pred_check_branch
        %211 = sbr.rel (%p208) target = $region40
      $region39: #{tpu_custom_call.1} parent=5 // pred_region
        %s212 = ssub.s32 %s17, 1
        %s213 = sand.u32 %s30, 1
        %s214 = scalar_lea.sflag [#allocation3], %s213
        %s215 = sand.u32 %s30, 1
        %s216 = smul.addr %s215, 64
        %s217 = scalar_lea.vmem [#allocation2], %s216
        // Predicated region
        $region41: #{tpu_custom_call.1} parent=39 // pred_check
          %p218 = pneg %p43
        $region42: #{tpu_custom_call.1} parent=39 // pred_check_branch
          %220 = sbr.rel (%p218) target = $region44
        $region43: #{tpu_custom_call.1} parent=39 // pred_region
          %222 = dma.done %s214, 1024
        $region44: #{tpu_custom_call.1} parent=39 // pred_fallthru
          _
        %s223 = sand.u32 %s30, 1
        %s224 = scalar_lea.sflag [#allocation3], %s223
        %s225 = sand.u32 %s30, 1
        %s226 = smul.addr %s225, 64
        %s227 = scalar_lea.vmem [#allocation2], %s226
        %p228 = pneg %p43
        %p229 = pneg %p40
        %p230 = pneg %p64
        %p231 = pneg %p61
        %p232 = pneg %p85
        %p233 = pneg %p82
        %p234 = pneg %p106
        %p235 = pneg %p103
        %p236 = pneg %p127
        %p237 = pneg %p124
        %p238 = pneg %p153
        %p239 = pneg %p150
        %s240 = sand.u32 %s140, 1
        %s241 = scalar_lea.sflag [#allocation4], %s240
        %s242 = sand.u32 %s140, 1
        %s243 = smul.addr %s242, 64
        %s244 = scalar_lea.vmem [#allocation5], %s243
        %v245 = vld [vmem:[%s217] sm:$0xff]
        %v246 = vld [vmem:[%s217 + $0x8] sm:$0xff]
        %v247 = vld [vmem:[%s217 + $0x10] sm:$0xff]
        %v248 = vld [vmem:[%s217 + $0x18] sm:$0xff]
        %v249 = vld [vmem:[%s217 + $0x20] sm:$0xff]
        %v250 = vld [vmem:[%s217 + $0x28] sm:$0xff]
        %v251 = vld [vmem:[%s217 + $0x30] sm:$0xff]
        %v252 = vld [vmem:[%s217 + $0x38] sm:$0xff]
        %v253 = vadd.f32 %v245, %v246
        %254 = vadd.xlane.f32.xlu0 %v253
        %v255 = vpop.xlane.xlu0 %254
        %v256 = vadd.f32 %v247, %v248
        %257 = vadd.xlane.f32.xlu0 %v256
        %v258 = vpop.xlane.xlu0 %257
        %v259 = vadd.f32 %v249, %v250
        %260 = vadd.xlane.f32.xlu0 %v259
        %v261 = vpop.xlane.xlu0 %260
        %v262 = vadd.f32 %v251, %v252
        %263 = vadd.xlane.f32.xlu0 %v262
        %v264 = vpop.xlane.xlu0 %263
        %v265 = vmul.f32 %v255, 0.00390625
        %v266 = vmul.f32 %v258, 0.00390625
        %v267 = vmul.f32 %v261, 0.00390625
        %v268 = vmul.f32 %v264, 0.00390625
        %v269 = vmax.f32 %v245, %v246
        %270 = vmax.xlane.f32.xlu0 %v269
        %v271 = vpop.xlane.xlu0 %270
        %v272 = vmax.f32 %v247, %v248
        %273 = vmax.xlane.f32.xlu0 %v272
        %v274 = vpop.xlane.xlu0 %273
        %v275 = vmax.f32 %v249, %v250
        %276 = vmax.xlane.f32.xlu0 %v275
        %v277 = vpop.xlane.xlu0 %276
        %v278 = vmax.f32 %v251, %v252
        %279 = vmax.xlane.f32.xlu0 %v278
        %v280 = vpop.xlane.xlu0 %279
        %v285 = vlaneseq
        %v286 = vand.u32 %v285, 127
        %v287 = vperm.slane %v265, %v286
        %v288 = vadd.s32 %v286, 4294967288
        %v289 = vperm.slane %v266, %v288
        %vm290 = vcmask 130112
        %v291 = vsel %vm290, %v289, %v287
        %v292 = vadd.s32 %v286, 4294967280
        %v293 = vperm.slane %v267, %v292
        %vm294 = vcmask 195712
        %v295 = vsel %vm294, %v293, %v291
        %v296 = vadd.s32 %v286, 4294967272
        %v297 = vperm.slane %v268, %v296
        %vm298 = vcmask 261312
        %v299 = vsel %vm298, %v297, %v295
        %v305 = vperm.slane %v271, %v286
        %v306 = vperm.slane %v274, %v288
        %v307 = vsel %vm290, %v306, %v305
        %v308 = vperm.slane %v277, %v292
        %v309 = vsel %vm294, %v308, %v307
        %v310 = vperm.slane %v280, %v296
        %v311 = vsel %vm298, %v310, %v309
        %vm313 = vcmask 1040384
        %v314 = vsel %vm313, %v299, %v311
        %v315 = vld [vmem:[%s1] sm:$0xff]
        %v316 = vld [vmem:[%s1 + $0x8] sm:$0xff]
        %v317 = vld [vmem:[%s1 + $0x10] sm:$0xff]
        %v318 = vld [vmem:[%s1 + $0x18] sm:$0xff]
        %v319 = vld [vmem:[%s2] sm:$0x1]
        %v321 = vperm.slane %v319, 0
        %vm323 = vcmask 261120
        %v325 = vsel %vm323, %v314, 0
        %327 = vmatpush.msra.mxu0 0.0
        %328 = vmatpush.msra.mxu0 0.0
        %329 = vmatpush.msra.mxu0 0.0
        %330 = vmatpush.msra.mxu0 0.0
        %331 = vmatpush.msra.mxu0 0.0
        %332 = vmatpush.msra.mxu0 0.0
        %333 = vmatpush.msra.mxu0 0.0
        %334 = vmatpush.msra.mxu0 0.0
        %335 = vmatpush.msra.mxu0 0.0
        %336 = vmatpush.msra.mxu0 0.0
        %337 = vmatpush.msra.mxu0 0.0
        %338 = vmatpush.msra.mxu0 0.0
        %339 = vmatpush.msra.mxu0 %v318
        %340 = vmatpush.msra.mxu0 %v317
        %341 = vmatpush.msra.mxu0 %v316
        %342 = vmatpush.msra.mxu0 %v315
        %343 = vmatmul.f32.gmra.mxu0 %v325
        %v344 = vpop.f32.mrf.mxu0
        %v345 = vadd.f32 %v321, %v344
        %346 = vdwg.mxu0
        %v347 = vmax.f32 %v345, 0.0
        %v349 = vrot.slane %v347, 1
        %v351 = vadd.f32 %v347, %v349
        %v352 = vld [vmem:[%s3] sm:$0xff]
        %v353 = vld [vmem:[%s4] sm:$0x1]
        %vm354 = vcmask 64512
        %v356 = vsel %vm354, %v351, 0
        %358 = vmatpush.msra.mxu0 0.0
        %359 = vmatpush.msra.mxu0 0.0
        %360 = vmatpush.msra.mxu0 0.0
        %361 = vmatpush.msra.mxu0 0.0
        %362 = vmatpush.msra.mxu0 0.0
        %363 = vmatpush.msra.mxu0 0.0
        %364 = vmatpush.msra.mxu0 0.0
        %365 = vmatpush.msra.mxu0 0.0
        %366 = vmatpush.msra.mxu0 0.0
        %367 = vmatpush.msra.mxu0 0.0
        %368 = vmatpush.msra.mxu0 0.0
        %369 = vmatpush.msra.mxu0 0.0
        %370 = vmatpush.msra.mxu0 0.0
        %371 = vmatpush.msra.mxu0 0.0
        %372 = vmatpush.msra.mxu0 0.0
        %373 = vmatpush.msra.mxu0 %v352
        %374 = vmatmul.f32.gmra.mxu0 %v356
        %v375 = vpop.f32.mrf.mxu0
        %v376 = vadd.f32 %v353, %v375
        %377 = vdwg.mxu0
        %v378 = vxor.u32 %v376, 2147483648
        %v379 = vmul.f32 %v378, 1.442695
        %v380 = vpow.pop %v379
        %v381 = vadd.f32 %v380, 1.0
        %v382 = vrcp.pop %v381
        %v383 = vmul.f32 %v381, %v382
        %v384 = vsub.f32 1.0, %v383
        %v385 = vmul.f32 %v382, %v384
        %v386 = vadd.f32 %v382, %v385
        %vm387 = vweird.f32 %v381
        %vm388 = vweird.f32 %v382
        %vm389 = vmor %vm387, %vm388
        %v390 = vsel %vm389, %v382, %v386
        %v391 = vand.u32 2147483647, %v381
        %vm392 = vcmp.eq.f32.partialorder %v391, 8.507059e+37
        %v393 = vand.u32 %v381, 2147483648
        %v394 = vor.u32 1.1754944e-38, %v393
        %v395 = vsel %vm392, %v394, %v390
        %v396 = vmul.f32 1.0, %v395
        %v397 = vperm.slane %v396, 0
        %v398 = vlaneseq
        %v399 = vshrl.u32 %v398, 7
        %401 = vset.pattern.permute.xlu0 %v399
        %402 = vperm.xlu0 %401, %v397
        %v403 = vpop.permute.xlu0 %402
        %v404 = vlaneseq
        %v405 = vshrl.u32 %v404, 7
        %v406 = vadd.s32 %v405, 8
        %407 = vset.pattern.permute.xlu0 %v406
        %408 = vperm.xlu0 %407, %v397
        %v409 = vpop.permute.xlu0 %408
        %v410 = vlaneseq
        %v411 = vshrl.u32 %v410, 7
        %v412 = vadd.s32 %v411, 16
        %413 = vset.pattern.permute.xlu0 %v412
        %414 = vperm.xlu0 %413, %v397
        %v415 = vpop.permute.xlu0 %414
        %v416 = vlaneseq
        %v417 = vshrl.u32 %v416, 7
        %v418 = vadd.s32 %v417, 24
        %419 = vset.pattern.permute.xlu0 %v418
        %420 = vperm.xlu0 %419, %v397
        %v421 = vpop.permute.xlu0 %420
        %v422 = vmul.f32 %v245, %v403
        %v423 = vmul.f32 %v246, %v403
        %v424 = vmul.f32 %v247, %v409
        %v425 = vmul.f32 %v248, %v409
        %v426 = vmul.f32 %v249, %v415
        %v427 = vmul.f32 %v250, %v415
        %v428 = vmul.f32 %v251, %v421
        %v429 = vmul.f32 %v252, %v421
        %430 = vst [vmem:[%s244] sm:$0xff] %v422
        %431 = vst [vmem:[%s244 + $0x8] sm:$0xff] %v423
        %432 = vst [vmem:[%s244 + $0x10] sm:$0xff] %v424
        %433 = vst [vmem:[%s244 + $0x18] sm:$0xff] %v425
        %434 = vst [vmem:[%s244 + $0x20] sm:$0xff] %v426
        %435 = vst [vmem:[%s244 + $0x28] sm:$0xff] %v427
        %436 = vst [vmem:[%s244 + $0x30] sm:$0xff] %v428
        %437 = vst [vmem:[%s244 + $0x38] sm:$0xff] %v429
        %s438 = sand.u32 %s140, 1
        %s439 = scalar_lea.sflag [#allocation4], %s438
        %s440 = sand.u32 %s140, 1
        %s441 = smul.addr %s440, 64
        %s442 = scalar_lea.vmem [#allocation5], %s441
        // Predicated region
        $region45: #{tpu_custom_call.1} parent=39 // pred_check
          %p443 = pneg %p150
        $region46: #{tpu_custom_call.1} parent=39 // pred_check_branch
          %445 = sbr.rel (%p443) target = $region48
        $region47: #{tpu_custom_call.1} parent=39 // pred_region
          %447 = vsyncadd %s439, 0
          %s448 = smul.addr %s22, 8
          %s449 = smul.addr %s448, 8
          %s450 = scalar_lea.hbm %s5, %s449
          %s451 = sshll.u32 %s442, 4
          %s452 = int_to_ptr.vmem [resolvable:$true] %s451
          %s453 = sshll.u32 %s450, 4
          %s454 = int_to_ptr.hbm [resolvable:$true] %s453
          %459 = dma.vmem_to_hbm [thread:$0]  %s452, 1024, %s454, %s439, 256, 256, 16
        $region48: #{tpu_custom_call.1} parent=39 // pred_fallthru
          _
      $region40: #{tpu_custom_call.1} parent=5 // pred_fallthru
        _
      %p460 = scmp.le.s32.totalorder 2, %s17
      // Predicated region
      $region49: #{tpu_custom_call.1} parent=5 // pred_check
        %p461 = pneg %p460
      $region50: #{tpu_custom_call.1} parent=5 // pred_check_branch
        %463 = sbr.rel (%p461) target = $region52
      $region51: #{tpu_custom_call.1} parent=5 // pred_region
        %s464 = ssub.s32 %s17, 2
        // Predicated region
        $region53: #{tpu_custom_call.1} parent=51 // pred_check
          %p465 = pneg %p156
        $region54: #{tpu_custom_call.1} parent=51 // pred_check_branch
          %467 = sbr.rel (%p465) target = $region56
        $region55: #{tpu_custom_call.1} parent=51 // pred_region
          %s468 = sand.u32 %s141, 1
          %s469 = scalar_lea.sflag [#allocation4], %s468
          %s470 = sand.u32 %s141, 1
          %s471 = smul.addr %s470, 64
          %s472 = scalar_lea.vmem [#allocation5], %s471
          %474 = dma.done %s469, 1024
        $region56: #{tpu_custom_call.1} parent=51 // pred_fallthru
          _
      $region52: #{tpu_custom_call.1} parent=5 // pred_fallthru
        _
    $region6: #{tpu_custom_call.1} parent=1 // loop_footer
      %s21 = sadd.s32 1, %s17
    $region7: #{tpu_custom_call.1} parent=1 // loop_footer_branch
      %16 = sbr.rel target = $region3
    $region8: #{tpu_custom_call.1} parent=1 // loop_exit
      _
    %475 = vsyncpa [#allocation3], 1
    %s476 = scalar_lea.sflag [#allocation3], 1
    %477 = vsyncpa %s476, 1
    %478 = vsyncpa [#allocation4], 1
    %s479 = scalar_lea.sflag [#allocation4], 1
    %480 = vsyncpa %s479, 1

</llo_original>
